<compile_context>
chip_gen: v5e
topology: v5e:2x2
jax: 0.10.0
libtpu: 0.0.40
codegen_flags: <defaults>
</compile_context>

<pallas_src>
import jax
import jax.numpy as jnp
from jax.experimental import pallas as pl
from jax.experimental.pallas import tpu as pltpu


def _round_up(x, m):
    return ((x + m - 1) // m) * m


def tiny_diffusion_kernel(x_ref, w1_ref, b1_ref, w2_ref, b2_ref, w3_ref, b3_ref,
                          o_ref):
    # Layer 1: fc_cond + concat + net[0] folded into a single K=(dim+cond_dim) matmul.
    z1 = jnp.dot(x_ref[...], w1_ref[...],
                 preferred_element_type=jnp.float32) + b1_ref[...]
    a1 = z1 * jax.nn.sigmoid(z1)                                   # SiLU, f32

    # net[2]: Linear(hidden, hidden)
    z2 = jnp.dot(a1.astype(w2_ref.dtype), w2_ref[...],
                 preferred_element_type=jnp.float32) + b2_ref[...]
    a2 = z2 * jax.nn.sigmoid(z2)                                   # SiLU, f32

    # net[4]: Linear(hidden, dim) -- weight padded to 128 lanes => dense vst.
    out = jnp.dot(a2.astype(w3_ref.dtype), w3_ref[...],
                  preferred_element_type=jnp.float32) + b3_ref[...]
    o_ref[...] = out.astype(o_ref.dtype)                           # bf16 store


def fuse_and_pack_params(params, dim, *, feed_dtype=jnp.bfloat16):
    """Fold fc_cond into net[0], merge layer-1 weights, pad the output layer
    to 128 lanes, cast MXU feeds. Done once on static weights."""
    hidden = params["w2"].shape[0]
    out_pad = _round_up(dim, 128)

    # cat([y, h]) @ W1 == cat([y, c]) @ [W1y ; Wc @ W1h] + bc @ W1h
    w1f = jnp.concatenate([params["w1y"], params["wc"] @ params["w1h"]], axis=0)
    b1f = params["bc"] @ params["w1h"] + params["b1"]     # (1, hidden)

    w3 = jnp.zeros((hidden, out_pad), jnp.float32).at[:, :dim].set(params["w3"])
    b3 = jnp.zeros((1, out_pad), jnp.float32).at[:, :dim].set(params["b3"])

    return {
        "w1": w1f.astype(feed_dtype),          # (dim + cond_dim, hidden)
        "b1": b1f.astype(jnp.float32),
        "w2": params["w2"].astype(feed_dtype),
        "b2": params["b2"].astype(jnp.float32),
        "w3": w3.astype(feed_dtype),           # (hidden, out_pad)
        "b3": b3.astype(jnp.float32),
    }


def _choose_batch_tile(B, block_b, min_steps, align):
    """16-aligned tile, <= block_b, >= min_steps grid steps, minimal padding."""
    if B <= align * min_steps:
        return _round_up(max(B, 1), align)
    steps = max(min_steps, pl.cdiv(B, block_b))
    return min(_round_up(block_b, align), _round_up(pl.cdiv(B, steps), align))


def tiny_diffusion_forward(y_noisy, cond_vec, packed, *, block_b=1024,
                           min_steps=2, out_dtype=jnp.bfloat16):
    """packed: output of fuse_and_pack_params."""
    B, dim = y_noisy.shape
    in_feat = packed["w1"].shape[0]            # dim + cond_dim
    hidden = packed["w2"].shape[0]
    out_pad = packed["w3"].shape[1]
    feed_dtype = packed["w2"].dtype

    # Single fused activation stream: cat([y, c]) -> one matmul operand, one DMA stream.
    x = jnp.concatenate([y_noisy, cond_vec], axis=1).astype(feed_dtype)

    # min_steps=2 keeps both v7x TensorCores busy; costs one extra ~0.35us grid
    # step on single-TC v5e/v6e (negligible). Padding stays minimal.
    tb = _choose_batch_tile(B, block_b, min_steps, align=16)
    b_pad = _round_up(B, tb)
    if b_pad != B:
        x = jnp.pad(x, ((0, b_pad - B), (0, 0)))

    def act_spec(cols):
        return pl.BlockSpec((tb, cols), lambda i: (i, 0))

    def const_spec(rows, cols):
        # Constant block index => fetched once, VMEM-resident across grid steps.
        # (pl.Buffered(1) single-buffering skipped: constants total ~70 KB at hidden=128.)
        return pl.BlockSpec((rows, cols), lambda i: (0, 0))

    feed_sz = jnp.dtype(feed_dtype).itemsize
    out_sz = jnp.dtype(out_dtype).itemsize
    w_elems = in_feat * hidden + hidden * hidden + hidden * out_pad
    cost = pl.CostEstimate(
        flops=2 * b_pad * w_elems,
        transcendentals=2 * b_pad * hidden,
        bytes_accessed=(b_pad * in_feat * feed_sz
                        + b_pad * out_pad * out_sz
                        + w_elems * feed_sz
                        + (2 * hidden + out_pad) * 4),
    )

    out = pl.pallas_call(
        tiny_diffusion_kernel,
        out_shape=jax.ShapeDtypeStruct((b_pad, out_pad), out_dtype),
        grid=(b_pad // tb,),
        in_specs=[
            act_spec(in_feat),                  # cat([y, c]) tile
            const_spec(in_feat, hidden),        # w1  (= [w1y ; wc @ w1h])
            const_spec(1, hidden),              # b1  (= bc @ w1h + b1)
            const_spec(hidden, hidden),         # w2
            const_spec(1, hidden),              # b2
            const_spec(hidden, out_pad),        # w3 (lane-padded)
            const_spec(1, out_pad),             # b3 (lane-padded)
        ],
        out_specs=act_spec(out_pad),
        compiler_params=pltpu.CompilerParams(
            dimension_semantics=("parallel",)),
        cost_estimate=cost,
    )(x, packed["w1"], packed["b1"], packed["w2"], packed["b2"],
      packed["w3"], packed["b3"])

    # TODO(synk): downstream consumers could take the lane-padded bf16 slab
    # directly and skip this XLA slice pass.
    return out[:B, :dim]


def init_params(key, dim, cond_dim, hidden):
    """Deterministic synthetic params; PyTorch-Linear-style uniform init.

    Weights are stored pre-transposed as (in_features, out_features); net[0]
    is stored split as w1y (dim, hidden) / w1h (hidden, hidden) so
    cat([y, h]) @ W1 == y @ w1y + h @ w1h.
    """
    ks = jax.random.split(key, 8)

    def linear(kw, kb, fan_in, fan_out):
        bound = 1.0 / jnp.sqrt(fan_in)
        w = jax.random.uniform(kw, (fan_in, fan_out), jnp.float32, -bound, bound)
        b = jax.random.uniform(kb, (1, fan_out), jnp.float32, -bound, bound)
        return w, b

    wc, bc = linear(ks[0], ks[1], cond_dim, hidden)
    w1, b1 = linear(ks[2], ks[3], dim + hidden, hidden)
    w2, b2 = linear(ks[4], ks[5], hidden, hidden)
    w3, b3 = linear(ks[6], ks[7], hidden, dim)

    return {
        "wc": wc, "bc": bc,
        "w1y": w1[:dim, :], "w1h": w1[dim:, :], "b1": b1,
        "w2": w2, "b2": b2,
        "w3": w3, "b3": b3,
    }


def reference_forward(y_noisy, cond_vec, params):
    """Pure-JAX f32 reference mirroring the PyTorch module (no fusion)."""
    h = cond_vec @ params["wc"] + params["bc"]
    w1 = jnp.concatenate([params["w1y"], params["w1h"]], axis=0)
    x = jnp.concatenate([y_noisy, h], axis=1)
    z1 = x @ w1 + params["b1"]
    a1 = z1 * jax.nn.sigmoid(z1)
    z2 = a1 @ params["w2"] + params["b2"]
    a2 = z2 * jax.nn.sigmoid(z2)
    return a2 @ params["w3"] + params["b3"]


if __name__ == "__main__":
    # Small but grid-exercising shapes: B=200 -> tb=112, 2 batch tiles (keeps
    # both v7x TensorCores busy); hidden=128 keeps the feature axis lane-aligned.
    B, DIM, COND_DIM, HIDDEN = 200, 8, 16, 128

    key = jax.random.PRNGKey(0)
    k_y, k_c, k_p = jax.random.split(key, 3)

    y_noisy = jax.random.normal(k_y, (B, DIM), jnp.float32)
    cond_vec = jax.random.normal(k_c, (B, COND_DIM), jnp.float32)
    params = init_params(k_p, DIM, COND_DIM, HIDDEN)
    packed = fuse_and_pack_params(params, DIM)

    out = tiny_diffusion_forward(y_noisy, cond_vec, packed)
    out = jax.block_until_ready(out)

    ref = reference_forward(y_noisy, cond_vec, params)
    assert out.shape == (B, DIM)
    # bf16 MXU feeds + bf16 output store => compare against the f32 reference
    # with a bf16-appropriate tolerance.
    err = jnp.max(jnp.abs(out.astype(jnp.float32) - ref))
    assert jnp.allclose(out.astype(jnp.float32), ref, atol=3e-2, rtol=3e-2), float(err)

    print("KERNEL_OK")
</pallas_src>

<mosaic_0001>
module attributes {stable_mosaic.version = 11 : i64} {
  func.func @tiny_diffusion_kernel(%arg0: i32, %arg1: memref<112x24xbf16, #tpu.memory_space<vmem>>, %arg2: memref<24x128xbf16, #tpu.memory_space<vmem>>, %arg3: memref<1x128xf32, #tpu.memory_space<vmem>>, %arg4: memref<128x128xbf16, #tpu.memory_space<vmem>>, %arg5: memref<1x128xf32, #tpu.memory_space<vmem>>, %arg6: memref<128x128xbf16, #tpu.memory_space<vmem>>, %arg7: memref<1x128xf32, #tpu.memory_space<vmem>>, %arg8: memref<112x128xbf16, #tpu.memory_space<vmem>>) attributes {dimension_semantics = [#tpu.dimension_semantics<parallel>], iteration_bounds = array<i64: 2>, scalar_prefetch = 0 : i64, scratch_operands = 0 : i64, tpu.core_type = #tpu.core_type<tc>, window_params = [{transform_indices = @transform_0, window_bounds = array<i64: 112, 24>}, {pipeline_mode = #tpu.pipeline_mode<synchronous>, transform_indices = @transform_1, window_bounds = array<i64: 24, 128>}, {pipeline_mode = #tpu.pipeline_mode<synchronous>, transform_indices = @transform_2, window_bounds = array<i64: 1, 128>}, {pipeline_mode = #tpu.pipeline_mode<synchronous>, transform_indices = @transform_3, window_bounds = array<i64: 128, 128>}, {pipeline_mode = #tpu.pipeline_mode<synchronous>, transform_indices = @transform_4, window_bounds = array<i64: 1, 128>}, {pipeline_mode = #tpu.pipeline_mode<synchronous>, transform_indices = @transform_5, window_bounds = array<i64: 128, 128>}, {pipeline_mode = #tpu.pipeline_mode<synchronous>, transform_indices = @transform_6, window_bounds = array<i64: 1, 128>}, {transform_indices = @transform_7, window_bounds = array<i64: 112, 128>}]} {
    %c0 = arith.constant 0 : index
    %c0_0 = arith.constant 0 : index
    %0 = vector.load %arg1[%c0, %c0_0] : memref<112x24xbf16, #tpu.memory_space<vmem>>, vector<112x24xbf16>
    %c0_1 = arith.constant 0 : index
    %c0_2 = arith.constant 0 : index
    %1 = vector.load %arg2[%c0_1, %c0_2] : memref<24x128xbf16, #tpu.memory_space<vmem>>, vector<24x128xbf16>
    %cst = arith.constant dense<0.000000e+00> : vector<112x128xf32>
    %2 = tpu.matmul %0, %1, %cst {dimension_numbers = #tpu.dot_dimension_numbers<[1], [0], [0], [1], [0, 0, 1, 1], [], []>} : vector<112x24xbf16>, vector<24x128xbf16>, vector<112x128xf32> -> vector<112x128xf32>
    %c0_3 = arith.constant 0 : index
    %c0_4 = arith.constant 0 : index
    %3 = vector.load %arg3[%c0_3, %c0_4] : memref<1x128xf32, #tpu.memory_space<vmem>>, vector<1x128xf32>
    %4 = vector.broadcast %3 : vector<1x128xf32> to vector<112x128xf32>
    %5 = arith.addf %2, %4 : vector<112x128xf32>
    %6 = arith.negf %5 : vector<112x128xf32>
    %7 = math.exp %6 : vector<112x128xf32>
    %cst_5 = arith.constant 1.000000e+00 : f32
    %8 = vector.broadcast %cst_5 : f32 to vector<112x128xf32>
    %9 = arith.addf %8, %7 : vector<112x128xf32>
    %10 = arith.divf %8, %9 : vector<112x128xf32>
    %11 = arith.mulf %5, %10 : vector<112x128xf32>
    %12 = arith.truncf %11 : vector<112x128xf32> to vector<112x128xbf16>
    %c0_6 = arith.constant 0 : index
    %c0_7 = arith.constant 0 : index
    %13 = vector.load %arg4[%c0_6, %c0_7] : memref<128x128xbf16, #tpu.memory_space<vmem>>, vector<128x128xbf16>
    %cst_8 = arith.constant dense<0.000000e+00> : vector<112x128xf32>
    %14 = tpu.matmul %12, %13, %cst_8 {dimension_numbers = #tpu.dot_dimension_numbers<[1], [0], [0], [1], [0, 0, 1, 1], [], []>} : vector<112x128xbf16>, vector<128x128xbf16>, vector<112x128xf32> -> vector<112x128xf32>
    %c0_9 = arith.constant 0 : index
    %c0_10 = arith.constant 0 : index
    %15 = vector.load %arg5[%c0_9, %c0_10] : memref<1x128xf32, #tpu.memory_space<vmem>>, vector<1x128xf32>
    %16 = vector.broadcast %15 : vector<1x128xf32> to vector<112x128xf32>
    %17 = arith.addf %14, %16 : vector<112x128xf32>
    %18 = arith.negf %17 : vector<112x128xf32>
    %19 = math.exp %18 : vector<112x128xf32>
    %cst_11 = arith.constant 1.000000e+00 : f32
    %20 = vector.broadcast %cst_11 : f32 to vector<112x128xf32>
    %21 = arith.addf %20, %19 : vector<112x128xf32>
    %22 = arith.divf %20, %21 : vector<112x128xf32>
    %23 = arith.mulf %17, %22 : vector<112x128xf32>
    %24 = arith.truncf %23 : vector<112x128xf32> to vector<112x128xbf16>
    %c0_12 = arith.constant 0 : index
    %c0_13 = arith.constant 0 : index
    %25 = vector.load %arg6[%c0_12, %c0_13] : memref<128x128xbf16, #tpu.memory_space<vmem>>, vector<128x128xbf16>
    %cst_14 = arith.constant dense<0.000000e+00> : vector<112x128xf32>
    %26 = tpu.matmul %24, %25, %cst_14 {dimension_numbers = #tpu.dot_dimension_numbers<[1], [0], [0], [1], [0, 0, 1, 1], [], []>} : vector<112x128xbf16>, vector<128x128xbf16>, vector<112x128xf32> -> vector<112x128xf32>
    %c0_15 = arith.constant 0 : index
    %c0_16 = arith.constant 0 : index
    %27 = vector.load %arg7[%c0_15, %c0_16] : memref<1x128xf32, #tpu.memory_space<vmem>>, vector<1x128xf32>
    %28 = vector.broadcast %27 : vector<1x128xf32> to vector<112x128xf32>
    %29 = arith.addf %26, %28 : vector<112x128xf32>
    %30 = arith.truncf %29 : vector<112x128xf32> to vector<112x128xbf16>
    %c0_17 = arith.constant 0 : index
    %c0_18 = arith.constant 0 : index
    %31 = vector.load %arg8[%c0_17, %c0_18] : memref<112x128xbf16, #tpu.memory_space<vmem>>, vector<112x128xbf16>
    tpu.vector_store %arg8[%c0_17, %c0_18], %30 {strides = array<i32>} : memref<112x128xbf16, #tpu.memory_space<vmem>>, vector<112x128xbf16>,
    return
  }
  func.func @transform_0(%arg0: i32) -> (i32, i32) {
    %c0_i32 = arith.constant 0 : i32
    %c0_i32_0 = arith.constant 0 : i32
    return %arg0, %c0_i32 : i32, i32
  }
  func.func @transform_1(%arg0: i32) -> (i32, i32) {
    %c0_i32 = arith.constant 0 : i32
    %c0_i32_0 = arith.constant 0 : i32
    %c0_i32_1 = arith.constant 0 : i32
    return %c0_i32, %c0_i32_0 : i32, i32
  }
  func.func @transform_2(%arg0: i32) -> (i32, i32) {
    %c0_i32 = arith.constant 0 : i32
    %c0_i32_0 = arith.constant 0 : i32
    %c0_i32_1 = arith.constant 0 : i32
    return %c0_i32, %c0_i32_0 : i32, i32
  }
  func.func @transform_3(%arg0: i32) -> (i32, i32) {
    %c0_i32 = arith.constant 0 : i32
    %c0_i32_0 = arith.constant 0 : i32
    %c0_i32_1 = arith.constant 0 : i32
    return %c0_i32, %c0_i32_0 : i32, i32
  }
  func.func @transform_4(%arg0: i32) -> (i32, i32) {
    %c0_i32 = arith.constant 0 : i32
    %c0_i32_0 = arith.constant 0 : i32
    %c0_i32_1 = arith.constant 0 : i32
    return %c0_i32, %c0_i32_0 : i32, i32
  }
  func.func @transform_5(%arg0: i32) -> (i32, i32) {
    %c0_i32 = arith.constant 0 : i32
    %c0_i32_0 = arith.constant 0 : i32
    %c0_i32_1 = arith.constant 0 : i32
    return %c0_i32, %c0_i32_0 : i32, i32
  }
  func.func @transform_6(%arg0: i32) -> (i32, i32) {
    %c0_i32 = arith.constant 0 : i32
    %c0_i32_0 = arith.constant 0 : i32
    %c0_i32_1 = arith.constant 0 : i32
    return %c0_i32, %c0_i32_0 : i32, i32
  }
  func.func @transform_7(%arg0: i32) -> (i32, i32) {
    %c0_i32 = arith.constant 0 : i32
    %c0_i32_0 = arith.constant 0 : i32
    return %arg0, %c0_i32 : i32, i32
  }
}

</mosaic_0001>

<llo_original>
// kernel: tpu_custom_call.1
$region0: #{tpu_custom_call.1}
  #allocation0 [shape = 'u32[]', space=smem, size = 0x4, offset = 0x4, fixed_abs, tag = 'smem constant byte address 0x4 - core index']
  #allocation1 [shape = 'u32[72,128]{1,0:T(1,128)}', space=vmem, size = 0x9000, scoped, tag = 'internal scratch']
  %s0 = inlined_call_operand.vmem [shape: bf16[224,24], index: 0, kind: input, shape index: {}]
  %s1 = inlined_call_operand.hbm [shape: bf16[24,128], index: 1, kind: input, shape index: {}]
  %s2 = inlined_call_operand.vmem [shape: f32[1,128], index: 2, kind: input, shape index: {}]
  %s3 = inlined_call_operand.vmem [shape: bf16[128,128], index: 3, kind: input, shape index: {}]
  %s4 = inlined_call_operand.vmem [shape: f32[1,128], index: 4, kind: input, shape index: {}]
  %s5 = inlined_call_operand.vmem [shape: bf16[128,128], index: 5, kind: input, shape index: {}]
  %s6 = inlined_call_operand.vmem [shape: f32[1,128], index: 6, kind: input, shape index: {}]
  %s7 = inlined_call_operand.hbm [shape: bf16[224,128], index: 7, kind: output, shape index: {}]
  %s8 = sld [smem:[#allocation0]]
  $region65: #{tpu_custom_call.1} parent=0
    _
  %s10 = ssub.s32 1, %s8
  %s11 = scalar_select 0, %s10, %s8
  $region1: #{tpu_custom_call.1} parent=0
    #allocation2 [shape = 'u8[6144]{0}', space=vmem, size = 0x1800, scoped, tag = 'input window, operand 1, single buffered']
    #allocation3 [shape = 's32[2]{0}', space=sflag, size = 0x8, scoped, tag = 'scoped memory for tpu_custom_call.1']
    #allocation4 [shape = 's32[2]{0}', space=sflag, size = 0x8, scoped, tag = 'scoped memory for tpu_custom_call.1']
    #allocation5 [shape = 'u8[57344]{0}', space=vmem, size = 0xe000, scoped, tag = 'output window, operand 0']
    %12 = vsyncpa [#allocation3], 0
    %13 = vsyncpa [#allocation4], 0
    %s14 = scalar_lea.sflag [#allocation4], 1
    %15 = vsyncpa %s14, 0
    loop: start=0, step=1, limit=4
    $region2: #{tpu_custom_call.1} parent=1 // loop_pre_header
      _
    $region3: #{tpu_custom_call.1} parent=1 // loop_header
      %s17 = sphi 0, %s21
      %p18 = scmp.ge.s32.totalorder %s17, 4
      %s27 = sphi 0, %s29
      %s30 = sphi 0, %s27
      %s31 = sphi 0, %s30
      %s47 = sphi 0, %s31
      %s51 = sphi 0, %s51
      %s53 = sphi 0, %s51
      %s54 = sphi 0, %s53
      %s68 = sphi 0, %s54
      %s72 = sphi 0, %s72
      %s74 = sphi 0, %s72
      %s75 = sphi 0, %s74
      %s89 = sphi 0, %s75
      %s93 = sphi 0, %s93
      %s95 = sphi 0, %s93
      %s96 = sphi 0, %s95
      %s110 = sphi 0, %s96
      %s114 = sphi 0, %s114
      %s116 = sphi 0, %s114
      %s117 = sphi 0, %s116
      %s131 = sphi 0, %s117
      %s135 = sphi 0, %s135
      %s137 = sphi 0, %s135
      %s138 = sphi 0, %s137
      %s152 = sphi 0, %s138
      %s156 = sphi 0, %s156
      %s158 = sphi 0, %s156
      %s159 = sphi 0, %s158
      %s173 = sphi 0, %s159
      %s179 = sphi 0, %s181
      %s182 = sphi 0, %s179
      %s183 = sphi 0, %s182
      %s199 = sphi 0, %s183
    $region4: #{tpu_custom_call.1} parent=1 // loop_header_branch
      %20 = sbr.rel (%p18) target = $region8
    $region5: #{tpu_custom_call.1} parent=1 // loop_body
      %s22 = ssub.s32 %s17, 1
      %s23 = ssub.s32 %s17, 2
      %s24 = sadd.s32 %s17, 1
      %s25 = ssub.s32 %s17, %s24
      %p26 = scmp.eq.s32.totalorder %s25, 0
      %s28 = sadd.s32 %s27, 1
      %s29 = scalar_select %p26, %s27, %s28
      %p32 = pneg %p26
      %p33 = scmp.eq.s32.totalorder %s17, 1
      %p34 = por %p32, %p33
      %p35 = scmp.ne.s32.totalorder %s27, %s30
      %p36 = scmp.eq.s32.totalorder %s17, 0
      %p37 = por %p35, %p36
      %p38 = scmp.ne.s32.totalorder %s27, %s30
      %p39 = scmp.eq.s32.totalorder %s22, 1
      %p40 = por %p38, %p39
      %p41 = scmp.ne.s32.totalorder %s30, %s31
      %p42 = scmp.eq.s32.totalorder %s22, 0
      %p43 = por %p41, %p42
      %p44 = scmp.ne.s32.totalorder %s30, %s31
      %p45 = scmp.eq.s32.totalorder %s23, 1
      %p46 = por %p44, %p45
      %p48 = scmp.ne.s32.totalorder %s31, %s47
      %p49 = scmp.eq.s32.totalorder %s23, 0
      %p50 = por %p48, %p49
      %s52 = sadd.s32 %s51, 1
      %p55 = scmp.eq.s32.totalorder %s17, 1
      %p56 = scmp.ne.s32.totalorder %s51, %s53
      %p57 = scmp.eq.s32.totalorder %s17, 0
      %p58 = por %p56, %p57
      %p59 = scmp.ne.s32.totalorder %s51, %s53
      %p60 = scmp.eq.s32.totalorder %s22, 1
      %p61 = por %p59, %p60
      %p62 = scmp.ne.s32.totalorder %s53, %s54
      %p63 = scmp.eq.s32.totalorder %s22, 0
      %p64 = por %p62, %p63
      %p65 = scmp.ne.s32.totalorder %s53, %s54
      %p66 = scmp.eq.s32.totalorder %s23, 1
      %p67 = por %p65, %p66
      %p69 = scmp.ne.s32.totalorder %s54, %s68
      %p70 = scmp.eq.s32.totalorder %s23, 0
      %p71 = por %p69, %p70
      %s73 = sadd.s32 %s72, 1
      %p76 = scmp.eq.s32.totalorder %s17, 1
      %p77 = scmp.ne.s32.totalorder %s72, %s74
      %p78 = scmp.eq.s32.totalorder %s17, 0
      %p79 = por %p77, %p78
      %p80 = scmp.ne.s32.totalorder %s72, %s74
      %p81 = scmp.eq.s32.totalorder %s22, 1
      %p82 = por %p80, %p81
      %p83 = scmp.ne.s32.totalorder %s74, %s75
      %p84 = scmp.eq.s32.totalorder %s22, 0
      %p85 = por %p83, %p84
      %p86 = scmp.ne.s32.totalorder %s74, %s75
      %p87 = scmp.eq.s32.totalorder %s23, 1
      %p88 = por %p86, %p87
      %p90 = scmp.ne.s32.totalorder %s75, %s89
      %p91 = scmp.eq.s32.totalorder %s23, 0
      %p92 = por %p90, %p91
      %s94 = sadd.s32 %s93, 1
      %p97 = scmp.eq.s32.totalorder %s17, 1
      %p98 = scmp.ne.s32.totalorder %s93, %s95
      %p99 = scmp.eq.s32.totalorder %s17, 0
      %p100 = por %p98, %p99
      %p101 = scmp.ne.s32.totalorder %s93, %s95
      %p102 = scmp.eq.s32.totalorder %s22, 1
      %p103 = por %p101, %p102
      %p104 = scmp.ne.s32.totalorder %s95, %s96
      %p105 = scmp.eq.s32.totalorder %s22, 0
      %p106 = por %p104, %p105
      %p107 = scmp.ne.s32.totalorder %s95, %s96
      %p108 = scmp.eq.s32.totalorder %s23, 1
      %p109 = por %p107, %p108
      %p111 = scmp.ne.s32.totalorder %s96, %s110
      %p112 = scmp.eq.s32.totalorder %s23, 0
      %p113 = por %p111, %p112
      %s115 = sadd.s32 %s114, 1
      %p118 = scmp.eq.s32.totalorder %s17, 1
      %p119 = scmp.ne.s32.totalorder %s114, %s116
      %p120 = scmp.eq.s32.totalorder %s17, 0
      %p121 = por %p119, %p120
      %p122 = scmp.ne.s32.totalorder %s114, %s116
      %p123 = scmp.eq.s32.totalorder %s22, 1
      %p124 = por %p122, %p123
      %p125 = scmp.ne.s32.totalorder %s116, %s117
      %p126 = scmp.eq.s32.totalorder %s22, 0
      %p127 = por %p125, %p126
      %p128 = scmp.ne.s32.totalorder %s116, %s117
      %p129 = scmp.eq.s32.totalorder %s23, 1
      %p130 = por %p128, %p129
      %p132 = scmp.ne.s32.totalorder %s117, %s131
      %p133 = scmp.eq.s32.totalorder %s23, 0
      %p134 = por %p132, %p133
      %s136 = sadd.s32 %s135, 1
      %p139 = scmp.eq.s32.totalorder %s17, 1
      %p140 = scmp.ne.s32.totalorder %s135, %s137
      %p141 = scmp.eq.s32.totalorder %s17, 0
      %p142 = por %p140, %p141
      %p143 = scmp.ne.s32.totalorder %s135, %s137
      %p144 = scmp.eq.s32.totalorder %s22, 1
      %p145 = por %p143, %p144
      %p146 = scmp.ne.s32.totalorder %s137, %s138
      %p147 = scmp.eq.s32.totalorder %s22, 0
      %p148 = por %p146, %p147
      %p149 = scmp.ne.s32.totalorder %s137, %s138
      %p150 = scmp.eq.s32.totalorder %s23, 1
      %p151 = por %p149, %p150
      %p153 = scmp.ne.s32.totalorder %s138, %s152
      %p154 = scmp.eq.s32.totalorder %s23, 0
      %p155 = por %p153, %p154
      %s157 = sadd.s32 %s156, 1
      %p160 = scmp.eq.s32.totalorder %s17, 1
      %p161 = scmp.ne.s32.totalorder %s156, %s158
      %p162 = scmp.eq.s32.totalorder %s17, 0
      %p163 = por %p161, %p162
      %p164 = scmp.ne.s32.totalorder %s156, %s158
      %p165 = scmp.eq.s32.totalorder %s22, 1
      %p166 = por %p164, %p165
      %p167 = scmp.ne.s32.totalorder %s158, %s159
      %p168 = scmp.eq.s32.totalorder %s22, 0
      %p169 = por %p167, %p168
      %p170 = scmp.ne.s32.totalorder %s158, %s159
      %p171 = scmp.eq.s32.totalorder %s23, 1
      %p172 = por %p170, %p171
      %p174 = scmp.ne.s32.totalorder %s159, %s173
      %p175 = scmp.eq.s32.totalorder %s23, 0
      %p176 = por %p174, %p175
      %s177 = ssub.s32 %s17, %s24
      %p178 = scmp.eq.s32.totalorder %s177, 0
      %s180 = sadd.s32 %s179, 1
      %s181 = scalar_select %p178, %s179, %s180
      %p184 = pneg %p178
      %p185 = scmp.eq.s32.totalorder %s17, 1
      %p186 = por %p184, %p185
      %p187 = scmp.ne.s32.totalorder %s179, %s182
      %p188 = scmp.eq.s32.totalorder %s17, 0
      %p189 = por %p187, %p188
      %p190 = scmp.ne.s32.totalorder %s179, %s182
      %p191 = scmp.eq.s32.totalorder %s22, 1
      %p192 = por %p190, %p191
      %p193 = scmp.ne.s32.totalorder %s182, %s183
      %p194 = scmp.eq.s32.totalorder %s22, 0
      %p195 = por %p193, %p194
      %p196 = scmp.ne.s32.totalorder %s182, %s183
      %p197 = scmp.eq.s32.totalorder %s23, 1
      %p198 = por %p196, %p197
      %p200 = scmp.ne.s32.totalorder %s183, %s199
      %p201 = scmp.eq.s32.totalorder %s23, 0
      %p202 = por %p200, %p201
      %p203 = scmp.le.s32.totalorder 1, %s17
      %p204 = scmp.lt.s32.totalorder %s17, 3
      %p205 = pnand %p203, %p204
      %p206 = pneg %p205
      // Predicated region
      $region9: #{tpu_custom_call.1} parent=5 // pred_check
        _
      $region10: #{tpu_custom_call.1} parent=5 // pred_check_branch
        %208 = sbr.rel (%p205) target = $region12
      $region11: #{tpu_custom_call.1} parent=5 // pred_region
        %s209 = ssub.s32 %s17, 1
        // Predicated region
        $region13: #{tpu_custom_call.1} parent=11 // pred_check
          %p210 = pneg %p64
        $region14: #{tpu_custom_call.1} parent=11 // pred_check_branch
          %212 = sbr.rel (%p210) target = $region16
        $region15: #{tpu_custom_call.1} parent=11 // pred_region
          %214 = vsyncadd [#allocation3], 0
          %s215 = sshll.u32 %s1, 4
          %s216 = int_to_ptr.hbm [resolvable:$true] %s215
          %s217 = sshll.u32 [#allocation2], 4
          %s218 = int_to_ptr.vmem [resolvable:$true] %s217
          %223 = dma.hbm_to_vmem [thread:$0]  %s216, 192, %s218, [#allocation3], 64, 64, 4
        $region16: #{tpu_custom_call.1} parent=11 // pred_fallthru
          _
        // Predicated region
        $region17: #{tpu_custom_call.1} parent=11 // pred_check
          %p224 = pneg %p85
        $region18: #{tpu_custom_call.1} parent=11 // pred_check_branch
          %226 = sbr.rel (%p224) target = $region20
        $region19: #{tpu_custom_call.1} parent=11 // pred_region
          _
        $region20: #{tpu_custom_call.1} parent=11 // pred_fallthru
          _
        // Predicated region
        $region21: #{tpu_custom_call.1} parent=11 // pred_check
          %p227 = pneg %p106
        $region22: #{tpu_custom_call.1} parent=11 // pred_check_branch
          %229 = sbr.rel (%p227) target = $region24
        $region23: #{tpu_custom_call.1} parent=11 // pred_region
          _
        $region24: #{tpu_custom_call.1} parent=11 // pred_fallthru
          _
        // Predicated region
        $region25: #{tpu_custom_call.1} parent=11 // pred_check
          %p230 = pneg %p127
        $region26: #{tpu_custom_call.1} parent=11 // pred_check_branch
          %232 = sbr.rel (%p230) target = $region28
        $region27: #{tpu_custom_call.1} parent=11 // pred_region
          _
        $region28: #{tpu_custom_call.1} parent=11 // pred_fallthru
          _
        // Predicated region
        $region29: #{tpu_custom_call.1} parent=11 // pred_check
          %p233 = pneg %p148
        $region30: #{tpu_custom_call.1} parent=11 // pred_check_branch
          %235 = sbr.rel (%p233) target = $region32
        $region31: #{tpu_custom_call.1} parent=11 // pred_region
          _
        $region32: #{tpu_custom_call.1} parent=11 // pred_fallthru
          _
        // Predicated region
        $region33: #{tpu_custom_call.1} parent=11 // pred_check
          %p236 = pneg %p169
        $region34: #{tpu_custom_call.1} parent=11 // pred_check_branch
          %238 = sbr.rel (%p236) target = $region36
        $region35: #{tpu_custom_call.1} parent=11 // pred_region
          _
        $region36: #{tpu_custom_call.1} parent=11 // pred_fallthru
          _
      $region12: #{tpu_custom_call.1} parent=5 // pred_fallthru
        _
      %p239 = scmp.lt.s32.totalorder %s17, 2
      // Predicated region
      $region37: #{tpu_custom_call.1} parent=5 // pred_check
        %p240 = pneg %p239
      $region38: #{tpu_custom_call.1} parent=5 // pred_check_branch
        %242 = sbr.rel (%p240) target = $region40
      $region39: #{tpu_custom_call.1} parent=5 // pred_region
        // Predicated region
        $region41: #{tpu_custom_call.1} parent=39 // pred_check
          %p243 = pneg %p37
        $region42: #{tpu_custom_call.1} parent=39 // pred_check_branch
          %245 = sbr.rel (%p243) target = $region44
        $region43: #{tpu_custom_call.1} parent=39 // pred_region
          %s246 = smul.u32 14, %s17
          %p247 = scmp.lt.s32.totalorder %s246, 27
          %s248 = scalar_select %p247, %s246, 27
          %s249 = smul.addr %s248, 4
          %s250 = scalar_lea.vmem %s0, %s249
          %s251 = smul.u32 14, %s17
        $region44: #{tpu_custom_call.1} parent=39 // pred_fallthru
          _
      $region40: #{tpu_custom_call.1} parent=5 // pred_fallthru
        _
      %p252 = scmp.le.s32.totalorder 1, %s17
      %p253 = scmp.lt.s32.totalorder %s17, 3
      %p254 = pnand %p252, %p253
      %p255 = pneg %p254
      // Predicated region
      $region45: #{tpu_custom_call.1} parent=5 // pred_check
        _
      $region46: #{tpu_custom_call.1} parent=5 // pred_check_branch
        %257 = sbr.rel (%p254) target = $region48
      $region47: #{tpu_custom_call.1} parent=5 // pred_region
        %s258 = ssub.s32 %s17, 1
        // Predicated region
        $region49: #{tpu_custom_call.1} parent=47 // pred_check
          %p259 = pneg %p64
        $region50: #{tpu_custom_call.1} parent=47 // pred_check_branch
          %261 = sbr.rel (%p259) target = $region52
        $region51: #{tpu_custom_call.1} parent=47 // pred_region
          %263 = dma.done [#allocation3], 192
        $region52: #{tpu_custom_call.1} parent=47 // pred_fallthru
          _
        %s264 = smul.u32 14, %s22
        %p265 = scmp.lt.s32.totalorder %s264, 27
        %s266 = scalar_select %p265, %s264, 27
        %s267 = smul.addr %s266, 4
        %s268 = scalar_lea.vmem %s0, %s267
        %p269 = pneg %p43
        %p270 = pneg %p40
        %p271 = pneg %p64
        %p272 = pneg %p61
        %p273 = pneg %p85
        %p274 = pneg %p82
        %p275 = pneg %p106
        %p276 = pneg %p103
        %p277 = pneg %p127
        %p278 = pneg %p124
        %p279 = pneg %p148
        %p280 = pneg %p145
        %p281 = pneg %p169
        %p282 = pneg %p166
        %p283 = pneg %p195
        %p284 = pneg %p192
        %s285 = sand.u32 %s182, 1
        %s286 = scalar_lea.sflag [#allocation4], %s285
        %s287 = sand.u32 %s182, 1
        %s288 = smul.addr %s287, 56
        %s289 = scalar_lea.vmem [#allocation5], %s288
        %s290 = smul.u32 14, %s22
        %p291 = scmp.lt.s32.totalorder %s290, 27
        %s292 = scalar_select %p291, %s290, 27
        %s293 = smul.addr %s292, 4
        %s294 = scalar_lea.vmem %s0, %s293
        %s295 = smul.u32 14, %s22
        %s296 = smul.u32 14, %s22
        %v298 = vld [vmem:[%s294] sm:$0xf]
        %v299 = vld [vmem:[%s294 + $0x4] sm:$0xf]
        %v300 = vld [vmem:[%s294 + $0x8] sm:$0xf]
        %v301 = vld [vmem:[%s294 + $0xc] sm:$0xf]
        %v302 = vld [vmem:[%s294 + $0x10] sm:$0xf]
        %v303 = vld [vmem:[%s294 + $0x14] sm:$0xf]
        %v304 = vld [vmem:[%s294 + $0x18] sm:$0xf]
        %v305 = vld [vmem:[%s294 + $0x1c] sm:$0xf]
        %v306 = vld [vmem:[%s294 + $0x20] sm:$0xf]
        %v307 = vld [vmem:[%s294 + $0x24] sm:$0xf]
        %v308 = vld [vmem:[%s294 + $0x28] sm:$0xf]
        %v309 = vld [vmem:[%s294 + $0x2c] sm:$0xf]
        %v310 = vld [vmem:[%s294 + $0x30] sm:$0xf]
        %v311 = vld [vmem:[%s294 + $0x34] sm:$0xf]
        %v312 = vld [vmem:[#allocation2] sm:$0xf]
        %v313 = vld [vmem:[#allocation2 + $0x4] sm:$0xf]
        %v314 = vld [vmem:[#allocation2 + $0x8] sm:$0xf]
        %v315 = vld [vmem:[%s2] sm:$0x1]
        %v317 = vperm.slane %v315, 0
        %v333 = vunpack.c.l.b16 %v298
        %v334 = vunpack.c.l.b16 %v299
        %v335 = vunpack.c.l.b16 %v300
        %v336 = vunpack.c.l.b16 %v301
        %v337 = vunpack.c.l.b16 %v302
        %v338 = vunpack.c.l.b16 %v303
        %v339 = vunpack.c.l.b16 %v304
        %v340 = vunpack.c.l.b16 %v305
        %v341 = vunpack.c.l.b16 %v306
        %v342 = vunpack.c.l.b16 %v307
        %v343 = vunpack.c.l.b16 %v308
        %v344 = vunpack.c.l.b16 %v309
        %v345 = vunpack.c.l.b16 %v310
        %v346 = vunpack.c.l.b16 %v311
        %v347 = vpack.c.b16 %v334, %v333
        %v348 = vpack.c.b16 %v336, %v335
        %v349 = vpack.c.b16 %v338, %v337
        %v350 = vpack.c.b16 %v340, %v339
        %v351 = vpack.c.b16 %v342, %v341
        %v352 = vpack.c.b16 %v344, %v343
        %v353 = vpack.c.b16 %v346, %v345
        %v357 = vunpack.c.l.b16 %v312
        %v358 = vunpack.c.l.b16 %v313
        %v359 = vunpack.c.l.b16 %v314
        %v360 = vpack.c.b16 %v358, %v357
        %v361 = vpack.c.b16 %v359, %v359
        %vm363 = vcmask 195584
        %v365 = vsel %vm363, %v347, 0
        %v368 = vsel %vm363, %v348, 0
        %v371 = vsel %vm363, %v349, 0
        %v374 = vsel %vm363, %v350, 0
        %v377 = vsel %vm363, %v351, 0
        %v380 = vsel %vm363, %v352, 0
        %v383 = vsel %vm363, %v353, 0
        %vm385 = vcmask 1043456
        %v387 = vsel %vm385, %v361, 0
        %389 = vmatpush.bf16.msra.mxu0 0
        %390 = vmatpush.bf16.msra.mxu0 0
        %391 = vmatpush.bf16.msra.mxu0 0
        %392 = vmatpush.bf16.msra.mxu0 0
        %393 = vmatpush.bf16.msra.mxu0 0
        %394 = vmatpush.bf16.msra.mxu0 0
        %395 = vmatpush.bf16.msra.mxu0 %v387
        %396 = vmatpush.bf16.msra.mxu0 %v360
        %397 = vmatmul.bf16.gmra.mxu0 %v365
        %v398 = vpop.f32.mrf.mxu0
        %v399 = vadd.f32 %v317, %v398
        %v400 = vpop.f32.mrf.mxu0
        %v401 = vadd.f32 %v317, %v400
        %402 = vmatmul.bf16.gmra.mxu0 %v368
        %v403 = vpop.f32.mrf.mxu0
        %v404 = vadd.f32 %v317, %v403
        %v405 = vpop.f32.mrf.mxu0
        %v406 = vadd.f32 %v317, %v405
        %407 = vmatmul.bf16.gmra.mxu0 %v371
        %v408 = vpop.f32.mrf.mxu0
        %v409 = vadd.f32 %v317, %v408
        %v410 = vpop.f32.mrf.mxu0
        %v411 = vadd.f32 %v317, %v410
        %412 = vmatmul.bf16.gmra.mxu0 %v374
        %v413 = vpop.f32.mrf.mxu0
        %v414 = vadd.f32 %v317, %v413
        %v415 = vpop.f32.mrf.mxu0
        %v416 = vadd.f32 %v317, %v415
        %417 = vmatmul.bf16.gmra.mxu0 %v377
        %v418 = vpop.f32.mrf.mxu0
        %v419 = vadd.f32 %v317, %v418
        %v420 = vpop.f32.mrf.mxu0
        %v421 = vadd.f32 %v317, %v420
        %422 = vmatmul.bf16.gmra.mxu0 %v380
        %v423 = vpop.f32.mrf.mxu0
        %v424 = vadd.f32 %v317, %v423
        %v425 = vpop.f32.mrf.mxu0
        %v426 = vadd.f32 %v317, %v425
        %427 = vmatmul.bf16.gmra.mxu0 %v383
        %v428 = vpop.f32.mrf.mxu0
        %v429 = vadd.f32 %v317, %v428
        %v430 = vpop.f32.mrf.mxu0
        %v431 = vadd.f32 %v317, %v430
        %432 = vdwg.mxu0
        %v433 = vxor.u32 %v399, 2147483648
        %v434 = vxor.u32 %v401, 2147483648
        %v435 = vxor.u32 %v404, 2147483648
        %v436 = vxor.u32 %v406, 2147483648
        %v437 = vxor.u32 %v409, 2147483648
        %v438 = vxor.u32 %v411, 2147483648
        %v439 = vxor.u32 %v414, 2147483648
        %v440 = vxor.u32 %v416, 2147483648
        %v441 = vxor.u32 %v419, 2147483648
        %v442 = vxor.u32 %v421, 2147483648
        %v443 = vxor.u32 %v424, 2147483648
        %v444 = vxor.u32 %v426, 2147483648
        %v445 = vxor.u32 %v429, 2147483648
        %v446 = vxor.u32 %v431, 2147483648
        %v447 = vmul.f32 %v433, 1.442695
        %v448 = vpow.pop %v447
        %v449 = vmul.f32 %v434, 1.442695
        %v450 = vpow.pop %v449
        %v451 = vmul.f32 %v435, 1.442695
        %v452 = vpow.pop %v451
        %v453 = vmul.f32 %v436, 1.442695
        %v454 = vpow.pop %v453
        %v455 = vmul.f32 %v437, 1.442695
        %v456 = vpow.pop %v455
        %v457 = vmul.f32 %v438, 1.442695
        %v458 = vpow.pop %v457
        %v459 = vmul.f32 %v439, 1.442695
        %v460 = vpow.pop %v459
        %v461 = vmul.f32 %v440, 1.442695
        %v462 = vpow.pop %v461
        %v463 = vmul.f32 %v441, 1.442695
        %v464 = vpow.pop %v463
        %v465 = vmul.f32 %v442, 1.442695
        %v466 = vpow.pop %v465
        %v467 = vmul.f32 %v443, 1.442695
        %v468 = vpow.pop %v467
        %v469 = vmul.f32 %v444, 1.442695
        %v470 = vpow.pop %v469
        %v471 = vmul.f32 %v445, 1.442695
        %v472 = vpow.pop %v471
        %v473 = vmul.f32 %v446, 1.442695
        %v474 = vpow.pop %v473
        %v475 = vadd.f32 %v448, 1.0
        %v476 = vadd.f32 %v450, 1.0
        %v477 = vadd.f32 %v452, 1.0
        %v478 = vadd.f32 %v454, 1.0
        %v479 = vadd.f32 %v456, 1.0
        %v480 = vadd.f32 %v458, 1.0
        %v481 = vadd.f32 %v460, 1.0
        %v482 = vadd.f32 %v462, 1.0
        %v483 = vadd.f32 %v464, 1.0
        %v484 = vadd.f32 %v466, 1.0
        %v485 = vadd.f32 %v468, 1.0
        %v486 = vadd.f32 %v470, 1.0
        %v487 = vadd.f32 %v472, 1.0
        %v488 = vadd.f32 %v474, 1.0
        %v489 = vrcp.pop %v475
        %v490 = vmul.f32 %v475, %v489
        %v491 = vsub.f32 1.0, %v490
        %v492 = vmul.f32 %v489, %v491
        %v493 = vadd.f32 %v489, %v492
        %vm494 = vweird.f32 %v475
        %vm495 = vweird.f32 %v489
        %vm496 = vmor %vm494, %vm495
        %v497 = vsel %vm496, %v489, %v493
        %v498 = vand.u32 2147483647, %v475
        %vm499 = vcmp.eq.f32.partialorder %v498, 8.507059e+37
        %v500 = vand.u32 %v475, 2147483648
        %v501 = vor.u32 1.1754944e-38, %v500
        %v502 = vsel %vm499, %v501, %v497
        %v503 = vmul.f32 1.0, %v502
        %v504 = vrcp.pop %v476
        %v505 = vmul.f32 %v476, %v504
        %v506 = vsub.f32 1.0, %v505
        %v507 = vmul.f32 %v504, %v506
        %v508 = vadd.f32 %v504, %v507
        %vm509 = vweird.f32 %v476
        %vm510 = vweird.f32 %v504
        %vm511 = vmor %vm509, %vm510
        %v512 = vsel %vm511, %v504, %v508
        %v513 = vand.u32 2147483647, %v476
        %vm514 = vcmp.eq.f32.partialorder %v513, 8.507059e+37
        %v515 = vand.u32 %v476, 2147483648
        %v516 = vor.u32 1.1754944e-38, %v515
        %v517 = vsel %vm514, %v516, %v512
        %v518 = vmul.f32 1.0, %v517
        %v519 = vrcp.pop %v477
        %v520 = vmul.f32 %v477, %v519
        %v521 = vsub.f32 1.0, %v520
        %v522 = vmul.f32 %v519, %v521
        %v523 = vadd.f32 %v519, %v522
        %vm524 = vweird.f32 %v477
        %vm525 = vweird.f32 %v519
        %vm526 = vmor %vm524, %vm525
        %v527 = vsel %vm526, %v519, %v523
        %v528 = vand.u32 2147483647, %v477
        %vm529 = vcmp.eq.f32.partialorder %v528, 8.507059e+37
        %v530 = vand.u32 %v477, 2147483648
        %v531 = vor.u32 1.1754944e-38, %v530
        %v532 = vsel %vm529, %v531, %v527
        %v533 = vmul.f32 1.0, %v532
        %v534 = vrcp.pop %v478
        %v535 = vmul.f32 %v478, %v534
        %v536 = vsub.f32 1.0, %v535
        %v537 = vmul.f32 %v534, %v536
        %v538 = vadd.f32 %v534, %v537
        %vm539 = vweird.f32 %v478
        %vm540 = vweird.f32 %v534
        %vm541 = vmor %vm539, %vm540
        %v542 = vsel %vm541, %v534, %v538
        %v543 = vand.u32 2147483647, %v478
        %vm544 = vcmp.eq.f32.partialorder %v543, 8.507059e+37
        %v545 = vand.u32 %v478, 2147483648
        %v546 = vor.u32 1.1754944e-38, %v545
        %v547 = vsel %vm544, %v546, %v542
        %v548 = vmul.f32 1.0, %v547
        %v549 = vrcp.pop %v479
        %v550 = vmul.f32 %v479, %v549
        %v551 = vsub.f32 1.0, %v550
        %v552 = vmul.f32 %v549, %v551
        %v553 = vadd.f32 %v549, %v552
        %vm554 = vweird.f32 %v479
        %vm555 = vweird.f32 %v549
        %vm556 = vmor %vm554, %vm555
        %v557 = vsel %vm556, %v549, %v553
        %v558 = vand.u32 2147483647, %v479
        %vm559 = vcmp.eq.f32.partialorder %v558, 8.507059e+37
        %v560 = vand.u32 %v479, 2147483648
        %v561 = vor.u32 1.1754944e-38, %v560
        %v562 = vsel %vm559, %v561, %v557
        %v563 = vmul.f32 1.0, %v562
        %v564 = vrcp.pop %v480
        %v565 = vmul.f32 %v480, %v564
        %v566 = vsub.f32 1.0, %v565
        %v567 = vmul.f32 %v564, %v566
        %v568 = vadd.f32 %v564, %v567
        %vm569 = vweird.f32 %v480
        %vm570 = vweird.f32 %v564
        %vm571 = vmor %vm569, %vm570
        %v572 = vsel %vm571, %v564, %v568
        %v573 = vand.u32 2147483647, %v480
        %vm574 = vcmp.eq.f32.partialorder %v573, 8.507059e+37
        %v575 = vand.u32 %v480, 2147483648
        %v576 = vor.u32 1.1754944e-38, %v575
        %v577 = vsel %vm574, %v576, %v572
        %v578 = vmul.f32 1.0, %v577
        %v579 = vrcp.pop %v481
        %v580 = vmul.f32 %v481, %v579
        %v581 = vsub.f32 1.0, %v580
        %v582 = vmul.f32 %v579, %v581
        %v583 = vadd.f32 %v579, %v582
        %vm584 = vweird.f32 %v481
        %vm585 = vweird.f32 %v579
        %vm586 = vmor %vm584, %vm585
        %v587 = vsel %vm586, %v579, %v583
        %v588 = vand.u32 2147483647, %v481
        %vm589 = vcmp.eq.f32.partialorder %v588, 8.507059e+37
        %v590 = vand.u32 %v481, 2147483648
        %v591 = vor.u32 1.1754944e-38, %v590
        %v592 = vsel %vm589, %v591, %v587
        %v593 = vmul.f32 1.0, %v592
        %v594 = vrcp.pop %v482
        %v595 = vmul.f32 %v482, %v594
        %v596 = vsub.f32 1.0, %v595
        %v597 = vmul.f32 %v594, %v596
        %v598 = vadd.f32 %v594, %v597
        %vm599 = vweird.f32 %v482
        %vm600 = vweird.f32 %v594
        %vm601 = vmor %vm599, %vm600
        %v602 = vsel %vm601, %v594, %v598
        %v603 = vand.u32 2147483647, %v482
        %vm604 = vcmp.eq.f32.partialorder %v603, 8.507059e+37
        %v605 = vand.u32 %v482, 2147483648
        %v606 = vor.u32 1.1754944e-38, %v605
        %v607 = vsel %vm604, %v606, %v602
        %v608 = vmul.f32 1.0, %v607
        %v609 = vrcp.pop %v483
        %v610 = vmul.f32 %v483, %v609
        %v611 = vsub.f32 1.0, %v610
        %v612 = vmul.f32 %v609, %v611
        %v613 = vadd.f32 %v609, %v612
        %vm614 = vweird.f32 %v483
        %vm615 = vweird.f32 %v609
        %vm616 = vmor %vm614, %vm615
        %v617 = vsel %vm616, %v609, %v613
        %v618 = vand.u32 2147483647, %v483
        %vm619 = vcmp.eq.f32.partialorder %v618, 8.507059e+37
        %v620 = vand.u32 %v483, 2147483648
        %v621 = vor.u32 1.1754944e-38, %v620
        %v622 = vsel %vm619, %v621, %v617
        %v623 = vmul.f32 1.0, %v622
        %v624 = vrcp.pop %v484
        %v625 = vmul.f32 %v484, %v624
        %v626 = vsub.f32 1.0, %v625
        %v627 = vmul.f32 %v624, %v626
        %v628 = vadd.f32 %v624, %v627
        %vm629 = vweird.f32 %v484
        %vm630 = vweird.f32 %v624
        %vm631 = vmor %vm629, %vm630
        %v632 = vsel %vm631, %v624, %v628
        %v633 = vand.u32 2147483647, %v484
        %vm634 = vcmp.eq.f32.partialorder %v633, 8.507059e+37
        %v635 = vand.u32 %v484, 2147483648
        %v636 = vor.u32 1.1754944e-38, %v635
        %v637 = vsel %vm634, %v636, %v632
        %v638 = vmul.f32 1.0, %v637
        %v639 = vrcp.pop %v485
        %v640 = vmul.f32 %v485, %v639
        %v641 = vsub.f32 1.0, %v640
        %v642 = vmul.f32 %v639, %v641
        %v643 = vadd.f32 %v639, %v642
        %vm644 = vweird.f32 %v485
        %vm645 = vweird.f32 %v639
        %vm646 = vmor %vm644, %vm645
        %v647 = vsel %vm646, %v639, %v643
        %v648 = vand.u32 2147483647, %v485
        %vm649 = vcmp.eq.f32.partialorder %v648, 8.507059e+37
        %v650 = vand.u32 %v485, 2147483648
        %v651 = vor.u32 1.1754944e-38, %v650
        %v652 = vsel %vm649, %v651, %v647
        %v653 = vmul.f32 1.0, %v652
        %v654 = vrcp.pop %v486
        %v655 = vmul.f32 %v486, %v654
        %v656 = vsub.f32 1.0, %v655
        %v657 = vmul.f32 %v654, %v656
        %v658 = vadd.f32 %v654, %v657
        %vm659 = vweird.f32 %v486
        %vm660 = vweird.f32 %v654
        %vm661 = vmor %vm659, %vm660
        %v662 = vsel %vm661, %v654, %v658
        %v663 = vand.u32 2147483647, %v486
        %vm664 = vcmp.eq.f32.partialorder %v663, 8.507059e+37
        %v665 = vand.u32 %v486, 2147483648
        %v666 = vor.u32 1.1754944e-38, %v665
        %v667 = vsel %vm664, %v666, %v662
        %v668 = vmul.f32 1.0, %v667
        %v669 = vrcp.pop %v487
        %v670 = vmul.f32 %v487, %v669
        %v671 = vsub.f32 1.0, %v670
        %v672 = vmul.f32 %v669, %v671
        %v673 = vadd.f32 %v669, %v672
        %vm674 = vweird.f32 %v487
        %vm675 = vweird.f32 %v669
        %vm676 = vmor %vm674, %vm675
        %v677 = vsel %vm676, %v669, %v673
        %v678 = vand.u32 2147483647, %v487
        %vm679 = vcmp.eq.f32.partialorder %v678, 8.507059e+37
        %v680 = vand.u32 %v487, 2147483648
        %v681 = vor.u32 1.1754944e-38, %v680
        %v682 = vsel %vm679, %v681, %v677
        %v683 = vmul.f32 1.0, %v682
        %v684 = vrcp.pop %v488
        %v685 = vmul.f32 %v488, %v684
        %v686 = vsub.f32 1.0, %v685
        %v687 = vmul.f32 %v684, %v686
        %v688 = vadd.f32 %v684, %v687
        %vm689 = vweird.f32 %v488
        %vm690 = vweird.f32 %v684
        %vm691 = vmor %vm689, %vm690
        %v692 = vsel %vm691, %v684, %v688
        %v693 = vand.u32 2147483647, %v488
        %vm694 = vcmp.eq.f32.partialorder %v693, 8.507059e+37
        %v695 = vand.u32 %v488, 2147483648
        %v696 = vor.u32 1.1754944e-38, %v695
        %v697 = vsel %vm694, %v696, %v692
        %v698 = vmul.f32 1.0, %v697
        %v699 = vmul.f32 %v399, %v503
        %v700 = vmul.f32 %v401, %v518
        %v701 = vmul.f32 %v404, %v533
        %v702 = vmul.f32 %v406, %v548
        %v703 = vmul.f32 %v409, %v563
        %v704 = vmul.f32 %v411, %v578
        %v705 = vmul.f32 %v414, %v593
        %v706 = vmul.f32 %v416, %v608
        %v707 = vmul.f32 %v419, %v623
        %v708 = vmul.f32 %v421, %v638
        %v709 = vmul.f32 %v424, %v653
        %v710 = vmul.f32 %v426, %v668
        %v711 = vmul.f32 %v429, %v683
        %v712 = vmul.f32 %v431, %v698
        %v713 = vpack.c.bf16 %v700, %v699
        %v714 = vpack.c.bf16 %v702, %v701
        %v715 = vpack.c.bf16 %v704, %v703
        %v716 = vpack.c.bf16 %v706, %v705
        %v717 = vpack.c.bf16 %v708, %v707
        %v718 = vpack.c.bf16 %v710, %v709
        %v719 = vpack.c.bf16 %v712, %v711
        %v720 = vld [vmem:[%s3] sm:$0xf]
        %v721 = vld [vmem:[%s3 + $0x4] sm:$0xf]
        %v722 = vld [vmem:[%s3 + $0x8] sm:$0xf]
        %v723 = vld [vmem:[%s3 + $0xc] sm:$0xf]
        %v724 = vld [vmem:[%s3 + $0x10] sm:$0xf]
        %v725 = vld [vmem:[%s3 + $0x14] sm:$0xf]
        %v726 = vld [vmem:[%s3 + $0x18] sm:$0xf]
        %v727 = vld [vmem:[%s3 + $0x1c] sm:$0xf]
        %v728 = vld [vmem:[%s3 + $0x20] sm:$0xf]
        %v729 = vld [vmem:[%s3 + $0x24] sm:$0xf]
        %v730 = vld [vmem:[%s3 + $0x28] sm:$0xf]
        %v731 = vld [vmem:[%s3 + $0x2c] sm:$0xf]
        %v732 = vld [vmem:[%s3 + $0x30] sm:$0xf]
        %v733 = vld [vmem:[%s3 + $0x34] sm:$0xf]
        %v734 = vld [vmem:[%s3 + $0x38] sm:$0xf]
        %v735 = vld [vmem:[%s3 + $0x3c] sm:$0xf]
        %v736 = vld [vmem:[%s4] sm:$0x1]
        %v738 = vperm.slane %v736, 0
        %v756 = vunpack.c.l.b16 %v720
        %v757 = vunpack.c.l.b16 %v721
        %v758 = vunpack.c.l.b16 %v722
        %v759 = vunpack.c.l.b16 %v723
        %v760 = vunpack.c.l.b16 %v724
        %v761 = vunpack.c.l.b16 %v725
        %v762 = vunpack.c.l.b16 %v726
        %v763 = vunpack.c.l.b16 %v727
        %v764 = vunpack.c.l.b16 %v728
        %v765 = vunpack.c.l.b16 %v729
        %v766 = vunpack.c.l.b16 %v730
        %v767 = vunpack.c.l.b16 %v731
        %v768 = vunpack.c.l.b16 %v732
        %v769 = vunpack.c.l.b16 %v733
        %v770 = vunpack.c.l.b16 %v734
        %v771 = vunpack.c.l.b16 %v735
        %v772 = vpack.c.b16 %v757, %v756
        %v773 = vpack.c.b16 %v759, %v758
        %v774 = vpack.c.b16 %v761, %v760
        %v775 = vpack.c.b16 %v763, %v762
        %v776 = vpack.c.b16 %v765, %v764
        %v777 = vpack.c.b16 %v767, %v766
        %v778 = vpack.c.b16 %v769, %v768
        %v779 = vpack.c.b16 %v771, %v770
        %788 = vmatpush.bf16.msra.mxu0 %v779
        %789 = vmatpush.bf16.msra.mxu0 %v778
        %790 = vmatpush.bf16.msra.mxu0 %v777
        %791 = vmatpush.bf16.msra.mxu0 %v776
        %792 = vmatpush.bf16.msra.mxu0 %v775
        %793 = vmatpush.bf16.msra.mxu0 %v774
        %794 = vmatpush.bf16.msra.mxu0 %v773
        %795 = vmatpush.bf16.msra.mxu0 %v772
        %796 = vmatmul.bf16.gmra.mxu0 %v713
        %v797 = vpop.f32.mrf.mxu0
        %v798 = vadd.f32 %v738, %v797
        %v799 = vpop.f32.mrf.mxu0
        %v800 = vadd.f32 %v738, %v799
        %801 = vmatmul.bf16.gmra.mxu0 %v714
        %v802 = vpop.f32.mrf.mxu0
        %v803 = vadd.f32 %v738, %v802
        %v804 = vpop.f32.mrf.mxu0
        %v805 = vadd.f32 %v738, %v804
        %806 = vmatmul.bf16.gmra.mxu0 %v715
        %v807 = vpop.f32.mrf.mxu0
        %v808 = vadd.f32 %v738, %v807
        %v809 = vpop.f32.mrf.mxu0
        %v810 = vadd.f32 %v738, %v809
        %811 = vmatmul.bf16.gmra.mxu0 %v716
        %v812 = vpop.f32.mrf.mxu0
        %v813 = vadd.f32 %v738, %v812
        %v814 = vpop.f32.mrf.mxu0
        %v815 = vadd.f32 %v738, %v814
        %816 = vmatmul.bf16.gmra.mxu0 %v717
        %v817 = vpop.f32.mrf.mxu0
        %v818 = vadd.f32 %v738, %v817
        %v819 = vpop.f32.mrf.mxu0
        %v820 = vadd.f32 %v738, %v819
        %821 = vmatmul.bf16.gmra.mxu0 %v718
        %v822 = vpop.f32.mrf.mxu0
        %v823 = vadd.f32 %v738, %v822
        %v824 = vpop.f32.mrf.mxu0
        %v825 = vadd.f32 %v738, %v824
        %826 = vmatmul.bf16.gmra.mxu0 %v719
        %v827 = vpop.f32.mrf.mxu0
        %v828 = vadd.f32 %v738, %v827
        %v829 = vpop.f32.mrf.mxu0
        %v830 = vadd.f32 %v738, %v829
        %831 = vdwg.mxu0
        %v832 = vxor.u32 %v798, 2147483648
        %v833 = vxor.u32 %v800, 2147483648
        %v834 = vxor.u32 %v803, 2147483648
        %v835 = vxor.u32 %v805, 2147483648
        %v836 = vxor.u32 %v808, 2147483648
        %v837 = vxor.u32 %v810, 2147483648
        %v838 = vxor.u32 %v813, 2147483648
        %v839 = vxor.u32 %v815, 2147483648
        %v840 = vxor.u32 %v818, 2147483648
        %v841 = vxor.u32 %v820, 2147483648
        %v842 = vxor.u32 %v823, 2147483648
        %v843 = vxor.u32 %v825, 2147483648
        %v844 = vxor.u32 %v828, 2147483648
        %v845 = vxor.u32 %v830, 2147483648
        %v846 = vmul.f32 %v832, 1.442695
        %v847 = vpow.pop %v846
        %v848 = vmul.f32 %v833, 1.442695
        %v849 = vpow.pop %v848
        %v850 = vmul.f32 %v834, 1.442695
        %v851 = vpow.pop %v850
        %v852 = vmul.f32 %v835, 1.442695
        %v853 = vpow.pop %v852
        %v854 = vmul.f32 %v836, 1.442695
        %v855 = vpow.pop %v854
        %v856 = vmul.f32 %v837, 1.442695
        %v857 = vpow.pop %v856
        %v858 = vmul.f32 %v838, 1.442695
        %v859 = vpow.pop %v858
        %v860 = vmul.f32 %v839, 1.442695
        %v861 = vpow.pop %v860
        %v862 = vmul.f32 %v840, 1.442695
        %v863 = vpow.pop %v862
        %v864 = vmul.f32 %v841, 1.442695
        %v865 = vpow.pop %v864
        %v866 = vmul.f32 %v842, 1.442695
        %v867 = vpow.pop %v866
        %v868 = vmul.f32 %v843, 1.442695
        %v869 = vpow.pop %v868
        %v870 = vmul.f32 %v844, 1.442695
        %v871 = vpow.pop %v870
        %v872 = vmul.f32 %v845, 1.442695
        %v873 = vpow.pop %v872
        %v874 = vadd.f32 %v847, 1.0
        %v875 = vadd.f32 %v849, 1.0
        %v876 = vadd.f32 %v851, 1.0
        %v877 = vadd.f32 %v853, 1.0
        %v878 = vadd.f32 %v855, 1.0
        %v879 = vadd.f32 %v857, 1.0
        %v880 = vadd.f32 %v859, 1.0
        %v881 = vadd.f32 %v861, 1.0
        %v882 = vadd.f32 %v863, 1.0
        %v883 = vadd.f32 %v865, 1.0
        %v884 = vadd.f32 %v867, 1.0
        %v885 = vadd.f32 %v869, 1.0
        %v886 = vadd.f32 %v871, 1.0
        %v887 = vadd.f32 %v873, 1.0
        %v888 = vrcp.pop %v874
        %v889 = vmul.f32 %v874, %v888
        %v890 = vsub.f32 1.0, %v889
        %v891 = vmul.f32 %v888, %v890
        %v892 = vadd.f32 %v888, %v891
        %vm893 = vweird.f32 %v874
        %vm894 = vweird.f32 %v888
        %vm895 = vmor %vm893, %vm894
        %v896 = vsel %vm895, %v888, %v892
        %v897 = vand.u32 2147483647, %v874
        %vm898 = vcmp.eq.f32.partialorder %v897, 8.507059e+37
        %v899 = vand.u32 %v874, 2147483648
        %v900 = vor.u32 1.1754944e-38, %v899
        %v901 = vsel %vm898, %v900, %v896
        %v902 = vmul.f32 1.0, %v901
        %v903 = vrcp.pop %v875
        %v904 = vmul.f32 %v875, %v903
        %v905 = vsub.f32 1.0, %v904
        %v906 = vmul.f32 %v903, %v905
        %v907 = vadd.f32 %v903, %v906
        %vm908 = vweird.f32 %v875
        %vm909 = vweird.f32 %v903
        %vm910 = vmor %vm908, %vm909
        %v911 = vsel %vm910, %v903, %v907
        %v912 = vand.u32 2147483647, %v875
        %vm913 = vcmp.eq.f32.partialorder %v912, 8.507059e+37
        %v914 = vand.u32 %v875, 2147483648
        %v915 = vor.u32 1.1754944e-38, %v914
        %v916 = vsel %vm913, %v915, %v911
        %v917 = vmul.f32 1.0, %v916
        %v918 = vrcp.pop %v876
        %v919 = vmul.f32 %v876, %v918
        %v920 = vsub.f32 1.0, %v919
        %v921 = vmul.f32 %v918, %v920
        %v922 = vadd.f32 %v918, %v921
        %vm923 = vweird.f32 %v876
        %vm924 = vweird.f32 %v918
        %vm925 = vmor %vm923, %vm924
        %v926 = vsel %vm925, %v918, %v922
        %v927 = vand.u32 2147483647, %v876
        %vm928 = vcmp.eq.f32.partialorder %v927, 8.507059e+37
        %v929 = vand.u32 %v876, 2147483648
        %v930 = vor.u32 1.1754944e-38, %v929
        %v931 = vsel %vm928, %v930, %v926
        %v932 = vmul.f32 1.0, %v931
        %v933 = vrcp.pop %v877
        %v934 = vmul.f32 %v877, %v933
        %v935 = vsub.f32 1.0, %v934
        %v936 = vmul.f32 %v933, %v935
        %v937 = vadd.f32 %v933, %v936
        %vm938 = vweird.f32 %v877
        %vm939 = vweird.f32 %v933
        %vm940 = vmor %vm938, %vm939
        %v941 = vsel %vm940, %v933, %v937
        %v942 = vand.u32 2147483647, %v877
        %vm943 = vcmp.eq.f32.partialorder %v942, 8.507059e+37
        %v944 = vand.u32 %v877, 2147483648
        %v945 = vor.u32 1.1754944e-38, %v944
        %v946 = vsel %vm943, %v945, %v941
        %v947 = vmul.f32 1.0, %v946
        %v948 = vrcp.pop %v878
        %v949 = vmul.f32 %v878, %v948
        %v950 = vsub.f32 1.0, %v949
        %v951 = vmul.f32 %v948, %v950
        %v952 = vadd.f32 %v948, %v951
        %vm953 = vweird.f32 %v878
        %vm954 = vweird.f32 %v948
        %vm955 = vmor %vm953, %vm954
        %v956 = vsel %vm955, %v948, %v952
        %v957 = vand.u32 2147483647, %v878
        %vm958 = vcmp.eq.f32.partialorder %v957, 8.507059e+37
        %v959 = vand.u32 %v878, 2147483648
        %v960 = vor.u32 1.1754944e-38, %v959
        %v961 = vsel %vm958, %v960, %v956
        %v962 = vmul.f32 1.0, %v961
        %v963 = vrcp.pop %v879
        %v964 = vmul.f32 %v879, %v963
        %v965 = vsub.f32 1.0, %v964
        %v966 = vmul.f32 %v963, %v965
        %v967 = vadd.f32 %v963, %v966
        %vm968 = vweird.f32 %v879
        %vm969 = vweird.f32 %v963
        %vm970 = vmor %vm968, %vm969
        %v971 = vsel %vm970, %v963, %v967
        %v972 = vand.u32 2147483647, %v879
        %vm973 = vcmp.eq.f32.partialorder %v972, 8.507059e+37
        %v974 = vand.u32 %v879, 2147483648
        %v975 = vor.u32 1.1754944e-38, %v974
        %v976 = vsel %vm973, %v975, %v971
        %v977 = vmul.f32 1.0, %v976
        %v978 = vrcp.pop %v880
        %v979 = vmul.f32 %v880, %v978
        %v980 = vsub.f32 1.0, %v979
        %v981 = vmul.f32 %v978, %v980
        %v982 = vadd.f32 %v978, %v981
        %vm983 = vweird.f32 %v880
        %vm984 = vweird.f32 %v978
        %vm985 = vmor %vm983, %vm984
        %v986 = vsel %vm985, %v978, %v982
        %v987 = vand.u32 2147483647, %v880
        %vm988 = vcmp.eq.f32.partialorder %v987, 8.507059e+37
        %v989 = vand.u32 %v880, 2147483648
        %v990 = vor.u32 1.1754944e-38, %v989
        %v991 = vsel %vm988, %v990, %v986
        %v992 = vmul.f32 1.0, %v991
        %v993 = vrcp.pop %v881
        %v994 = vmul.f32 %v881, %v993
        %v995 = vsub.f32 1.0, %v994
        %v996 = vmul.f32 %v993, %v995
        %v997 = vadd.f32 %v993, %v996
        %vm998 = vweird.f32 %v881
        %vm999 = vweird.f32 %v993
        %vm1000 = vmor %vm998, %vm999
        %v1001 = vsel %vm1000, %v993, %v997
        %v1002 = vand.u32 2147483647, %v881
        %vm1003 = vcmp.eq.f32.partialorder %v1002, 8.507059e+37
        %v1004 = vand.u32 %v881, 2147483648
        %v1005 = vor.u32 1.1754944e-38, %v1004
        %v1006 = vsel %vm1003, %v1005, %v1001
        %v1007 = vmul.f32 1.0, %v1006
        %v1008 = vrcp.pop %v882
        %v1009 = vmul.f32 %v882, %v1008
        %v1010 = vsub.f32 1.0, %v1009
        %v1011 = vmul.f32 %v1008, %v1010
        %v1012 = vadd.f32 %v1008, %v1011
        %vm1013 = vweird.f32 %v882
        %vm1014 = vweird.f32 %v1008
        %vm1015 = vmor %vm1013, %vm1014
        %v1016 = vsel %vm1015, %v1008, %v1012
        %v1017 = vand.u32 2147483647, %v882
        %vm1018 = vcmp.eq.f32.partialorder %v1017, 8.507059e+37
        %v1019 = vand.u32 %v882, 2147483648
        %v1020 = vor.u32 1.1754944e-38, %v1019
        %v1021 = vsel %vm1018, %v1020, %v1016
        %v1022 = vmul.f32 1.0, %v1021
        %v1023 = vrcp.pop %v883
        %v1024 = vmul.f32 %v883, %v1023
        %v1025 = vsub.f32 1.0, %v1024
        %v1026 = vmul.f32 %v1023, %v1025
        %v1027 = vadd.f32 %v1023, %v1026
        %vm1028 = vweird.f32 %v883
        %vm1029 = vweird.f32 %v1023
        %vm1030 = vmor %vm1028, %vm1029
        %v1031 = vsel %vm1030, %v1023, %v1027
        %v1032 = vand.u32 2147483647, %v883
        %vm1033 = vcmp.eq.f32.partialorder %v1032, 8.507059e+37
        %v1034 = vand.u32 %v883, 2147483648
        %v1035 = vor.u32 1.1754944e-38, %v1034
        %v1036 = vsel %vm1033, %v1035, %v1031
        %v1037 = vmul.f32 1.0, %v1036
        %v1038 = vrcp.pop %v884
        %v1039 = vmul.f32 %v884, %v1038
        %v1040 = vsub.f32 1.0, %v1039
        %v1041 = vmul.f32 %v1038, %v1040
        %v1042 = vadd.f32 %v1038, %v1041
        %vm1043 = vweird.f32 %v884
        %vm1044 = vweird.f32 %v1038
        %vm1045 = vmor %vm1043, %vm1044
        %v1046 = vsel %vm1045, %v1038, %v1042
        %v1047 = vand.u32 2147483647, %v884
        %vm1048 = vcmp.eq.f32.partialorder %v1047, 8.507059e+37
        %v1049 = vand.u32 %v884, 2147483648
        %v1050 = vor.u32 1.1754944e-38, %v1049
        %v1051 = vsel %vm1048, %v1050, %v1046
        %v1052 = vmul.f32 1.0, %v1051
        %v1053 = vrcp.pop %v885
        %v1054 = vmul.f32 %v885, %v1053
        %v1055 = vsub.f32 1.0, %v1054
        %v1056 = vmul.f32 %v1053, %v1055
        %v1057 = vadd.f32 %v1053, %v1056
        %vm1058 = vweird.f32 %v885
        %vm1059 = vweird.f32 %v1053
        %vm1060 = vmor %vm1058, %vm1059
        %v1061 = vsel %vm1060, %v1053, %v1057
        %v1062 = vand.u32 2147483647, %v885
        %vm1063 = vcmp.eq.f32.partialorder %v1062, 8.507059e+37
        %v1064 = vand.u32 %v885, 2147483648
        %v1065 = vor.u32 1.1754944e-38, %v1064
        %v1066 = vsel %vm1063, %v1065, %v1061
        %v1067 = vmul.f32 1.0, %v1066
        %v1068 = vrcp.pop %v886
        %v1069 = vmul.f32 %v886, %v1068
        %v1070 = vsub.f32 1.0, %v1069
        %v1071 = vmul.f32 %v1068, %v1070
        %v1072 = vadd.f32 %v1068, %v1071
        %vm1073 = vweird.f32 %v886
        %vm1074 = vweird.f32 %v1068
        %vm1075 = vmor %vm1073, %vm1074
        %v1076 = vsel %vm1075, %v1068, %v1072
        %v1077 = vand.u32 2147483647, %v886
        %vm1078 = vcmp.eq.f32.partialorder %v1077, 8.507059e+37
        %v1079 = vand.u32 %v886, 2147483648
        %v1080 = vor.u32 1.1754944e-38, %v1079
        %v1081 = vsel %vm1078, %v1080, %v1076
        %v1082 = vmul.f32 1.0, %v1081
        %v1083 = vrcp.pop %v887
        %v1084 = vmul.f32 %v887, %v1083
        %v1085 = vsub.f32 1.0, %v1084
        %v1086 = vmul.f32 %v1083, %v1085
        %v1087 = vadd.f32 %v1083, %v1086
        %vm1088 = vweird.f32 %v887
        %vm1089 = vweird.f32 %v1083
        %vm1090 = vmor %vm1088, %vm1089
        %v1091 = vsel %vm1090, %v1083, %v1087
        %v1092 = vand.u32 2147483647, %v887
        %vm1093 = vcmp.eq.f32.partialorder %v1092, 8.507059e+37
        %v1094 = vand.u32 %v887, 2147483648
        %v1095 = vor.u32 1.1754944e-38, %v1094
        %v1096 = vsel %vm1093, %v1095, %v1091
        %v1097 = vmul.f32 1.0, %v1096
        %v1098 = vmul.f32 %v798, %v902
        %v1099 = vmul.f32 %v800, %v917
        %v1100 = vmul.f32 %v803, %v932
        %v1101 = vmul.f32 %v805, %v947
        %v1102 = vmul.f32 %v808, %v962
        %v1103 = vmul.f32 %v810, %v977
        %v1104 = vmul.f32 %v813, %v992
        %v1105 = vmul.f32 %v815, %v1007
        %v1106 = vmul.f32 %v818, %v1022
        %v1107 = vmul.f32 %v820, %v1037
        %v1108 = vmul.f32 %v823, %v1052
        %v1109 = vmul.f32 %v825, %v1067
        %v1110 = vmul.f32 %v828, %v1082
        %v1111 = vmul.f32 %v830, %v1097
        %v1112 = vpack.c.bf16 %v1099, %v1098
        %v1113 = vpack.c.bf16 %v1101, %v1100
        %v1114 = vpack.c.bf16 %v1103, %v1102
        %v1115 = vpack.c.bf16 %v1105, %v1104
        %v1116 = vpack.c.bf16 %v1107, %v1106
        %v1117 = vpack.c.bf16 %v1109, %v1108
        %v1118 = vpack.c.bf16 %v1111, %v1110
        %v1119 = vld [vmem:[%s5] sm:$0xf]
        %v1120 = vld [vmem:[%s5 + $0x4] sm:$0xf]
        %v1121 = vld [vmem:[%s5 + $0x8] sm:$0xf]
        %v1122 = vld [vmem:[%s5 + $0xc] sm:$0xf]
        %v1123 = vld [vmem:[%s5 + $0x10] sm:$0xf]
        %v1124 = vld [vmem:[%s5 + $0x14] sm:$0xf]
        %v1125 = vld [vmem:[%s5 + $0x18] sm:$0xf]
        %v1126 = vld [vmem:[%s5 + $0x1c] sm:$0xf]
        %v1127 = vld [vmem:[%s5 + $0x20] sm:$0xf]
        %v1128 = vld [vmem:[%s5 + $0x24] sm:$0xf]
        %v1129 = vld [vmem:[%s5 + $0x28] sm:$0xf]
        %v1130 = vld [vmem:[%s5 + $0x2c] sm:$0xf]
        %v1131 = vld [vmem:[%s5 + $0x30] sm:$0xf]
        %v1132 = vld [vmem:[%s5 + $0x34] sm:$0xf]
        %v1133 = vld [vmem:[%s5 + $0x38] sm:$0xf]
        %v1134 = vld [vmem:[%s5 + $0x3c] sm:$0xf]
        %v1135 = vld [vmem:[%s6] sm:$0x1]
        %v1137 = vperm.slane %v1135, 0
        %v1155 = vunpack.c.l.b16 %v1119
        %v1156 = vunpack.c.l.b16 %v1120
        %v1157 = vunpack.c.l.b16 %v1121
        %v1158 = vunpack.c.l.b16 %v1122
        %v1159 = vunpack.c.l.b16 %v1123
        %v1160 = vunpack.c.l.b16 %v1124
        %v1161 = vunpack.c.l.b16 %v1125
        %v1162 = vunpack.c.l.b16 %v1126
        %v1163 = vunpack.c.l.b16 %v1127
        %v1164 = vunpack.c.l.b16 %v1128
        %v1165 = vunpack.c.l.b16 %v1129
        %v1166 = vunpack.c.l.b16 %v1130
        %v1167 = vunpack.c.l.b16 %v1131
        %v1168 = vunpack.c.l.b16 %v1132
        %v1169 = vunpack.c.l.b16 %v1133
        %v1170 = vunpack.c.l.b16 %v1134
        %v1171 = vpack.c.b16 %v1156, %v1155
        %v1172 = vpack.c.b16 %v1158, %v1157
        %v1173 = vpack.c.b16 %v1160, %v1159
        %v1174 = vpack.c.b16 %v1162, %v1161
        %v1175 = vpack.c.b16 %v1164, %v1163
        %v1176 = vpack.c.b16 %v1166, %v1165
        %v1177 = vpack.c.b16 %v1168, %v1167
        %v1178 = vpack.c.b16 %v1170, %v1169
        %1187 = vmatpush.bf16.msra.mxu0 %v1178
        %1188 = vmatpush.bf16.msra.mxu0 %v1177
        %1189 = vmatpush.bf16.msra.mxu0 %v1176
        %1190 = vmatpush.bf16.msra.mxu0 %v1175
        %1191 = vmatpush.bf16.msra.mxu0 %v1174
        %1192 = vmatpush.bf16.msra.mxu0 %v1173
        %1193 = vmatpush.bf16.msra.mxu0 %v1172
        %1194 = vmatpush.bf16.msra.mxu0 %v1171
        %1195 = vmatmul.bf16.gmra.mxu0 %v1112
        %v1196 = vpop.f32.mrf.mxu0
        %v1197 = vadd.f32 %v1137, %v1196
        %v1198 = vpop.f32.mrf.mxu0
        %v1199 = vadd.f32 %v1137, %v1198
        %1200 = vmatmul.bf16.gmra.mxu0 %v1113
        %v1201 = vpop.f32.mrf.mxu0
        %v1202 = vadd.f32 %v1137, %v1201
        %v1203 = vpop.f32.mrf.mxu0
        %v1204 = vadd.f32 %v1137, %v1203
        %1205 = vmatmul.bf16.gmra.mxu0 %v1114
        %v1206 = vpop.f32.mrf.mxu0
        %v1207 = vadd.f32 %v1137, %v1206
        %v1208 = vpop.f32.mrf.mxu0
        %v1209 = vadd.f32 %v1137, %v1208
        %1210 = vmatmul.bf16.gmra.mxu0 %v1115
        %v1211 = vpop.f32.mrf.mxu0
        %v1212 = vadd.f32 %v1137, %v1211
        %v1213 = vpop.f32.mrf.mxu0
        %v1214 = vadd.f32 %v1137, %v1213
        %1215 = vmatmul.bf16.gmra.mxu0 %v1116
        %v1216 = vpop.f32.mrf.mxu0
        %v1217 = vadd.f32 %v1137, %v1216
        %v1218 = vpop.f32.mrf.mxu0
        %v1219 = vadd.f32 %v1137, %v1218
        %1220 = vmatmul.bf16.gmra.mxu0 %v1117
        %v1221 = vpop.f32.mrf.mxu0
        %v1222 = vadd.f32 %v1137, %v1221
        %v1223 = vpop.f32.mrf.mxu0
        %v1224 = vadd.f32 %v1137, %v1223
        %1225 = vmatmul.bf16.gmra.mxu0 %v1118
        %v1226 = vpop.f32.mrf.mxu0
        %v1227 = vadd.f32 %v1137, %v1226
        %v1228 = vpop.f32.mrf.mxu0
        %v1229 = vadd.f32 %v1137, %v1228
        %1230 = vdwg.mxu0
        %v1231 = vpack.c.bf16 %v1197, %v1197
        %v1232 = vpack.c.bf16 %v1199, %v1199
        %v1233 = vpack.c.bf16 %v1202, %v1202
        %v1234 = vpack.c.bf16 %v1204, %v1204
        %v1235 = vpack.c.bf16 %v1207, %v1207
        %v1236 = vpack.c.bf16 %v1209, %v1209
        %v1237 = vpack.c.bf16 %v1212, %v1212
        %v1238 = vpack.c.bf16 %v1214, %v1214
        %v1239 = vpack.c.bf16 %v1217, %v1217
        %v1240 = vpack.c.bf16 %v1219, %v1219
        %v1241 = vpack.c.bf16 %v1222, %v1222
        %v1242 = vpack.c.bf16 %v1224, %v1224
        %v1243 = vpack.c.bf16 %v1227, %v1227
        %v1244 = vpack.c.bf16 %v1229, %v1229
        %1245 = vst [vmem:[%s289] sm:$0xf] %v1231
        %1246 = vst [vmem:[%s289 + $0x4] sm:$0xf] %v1232
        %1247 = vst [vmem:[%s289 + $0x8] sm:$0xf] %v1233
        %1248 = vst [vmem:[%s289 + $0xc] sm:$0xf] %v1234
        %1249 = vst [vmem:[%s289 + $0x10] sm:$0xf] %v1235
        %1250 = vst [vmem:[%s289 + $0x14] sm:$0xf] %v1236
        %1251 = vst [vmem:[%s289 + $0x18] sm:$0xf] %v1237
        %1252 = vst [vmem:[%s289 + $0x1c] sm:$0xf] %v1238
        %1253 = vst [vmem:[%s289 + $0x20] sm:$0xf] %v1239
        %1254 = vst [vmem:[%s289 + $0x24] sm:$0xf] %v1240
        %1255 = vst [vmem:[%s289 + $0x28] sm:$0xf] %v1241
        %1256 = vst [vmem:[%s289 + $0x2c] sm:$0xf] %v1242
        %1257 = vst [vmem:[%s289 + $0x30] sm:$0xf] %v1243
        %1258 = vst [vmem:[%s289 + $0x34] sm:$0xf] %v1244
        %s1259 = sand.u32 %s182, 1
        %s1260 = scalar_lea.sflag [#allocation4], %s1259
        %s1261 = sand.u32 %s182, 1
        %s1262 = smul.addr %s1261, 56
        %s1263 = scalar_lea.vmem [#allocation5], %s1262
        // Predicated region
        $region53: #{tpu_custom_call.1} parent=47 // pred_check
          %p1264 = pneg %p192
        $region54: #{tpu_custom_call.1} parent=47 // pred_check_branch
          %1266 = sbr.rel (%p1264) target = $region56
        $region55: #{tpu_custom_call.1} parent=47 // pred_region
          %s1267 = smul.u32 14, %s22
          %1269 = vsyncadd %s1260, 0
          %s1270 = smul.addr %s1267, 4
          %s1271 = scalar_lea.hbm %s7, %s1270
          %s1272 = sshll.u32 %s1263, 4
          %s1273 = int_to_ptr.vmem [resolvable:$true] %s1272
          %s1274 = sshll.u32 %s1271, 4
          %s1275 = int_to_ptr.hbm [resolvable:$true] %s1274
          %1280 = dma.vmem_to_hbm [thread:$0]  %s1273, 896, %s1275, %s1260, 64, 64, 4
        $region56: #{tpu_custom_call.1} parent=47 // pred_fallthru
          _
      $region48: #{tpu_custom_call.1} parent=5 // pred_fallthru
        _
      %p1281 = scmp.le.s32.totalorder 2, %s17
      // Predicated region
      $region57: #{tpu_custom_call.1} parent=5 // pred_check
        %p1282 = pneg %p1281
      $region58: #{tpu_custom_call.1} parent=5 // pred_check_branch
        %1284 = sbr.rel (%p1282) target = $region60
      $region59: #{tpu_custom_call.1} parent=5 // pred_region
        %s1285 = ssub.s32 %s17, 2
        // Predicated region
        $region61: #{tpu_custom_call.1} parent=59 // pred_check
          %p1286 = pneg %p198
        $region62: #{tpu_custom_call.1} parent=59 // pred_check_branch
          %1288 = sbr.rel (%p1286) target = $region64
        $region63: #{tpu_custom_call.1} parent=59 // pred_region
          %s1289 = sand.u32 %s183, 1
          %s1290 = scalar_lea.sflag [#allocation4], %s1289
          %s1291 = sand.u32 %s183, 1
          %s1292 = smul.addr %s1291, 56
          %s1293 = scalar_lea.vmem [#allocation5], %s1292
          %1295 = dma.done %s1290, 896
        $region64: #{tpu_custom_call.1} parent=59 // pred_fallthru
          _
      $region60: #{tpu_custom_call.1} parent=5 // pred_fallthru
        _
    $region6: #{tpu_custom_call.1} parent=1 // loop_footer
      %s21 = sadd.s32 1, %s17
    $region7: #{tpu_custom_call.1} parent=1 // loop_footer_branch
      %16 = sbr.rel target = $region3
    $region8: #{tpu_custom_call.1} parent=1 // loop_exit
      _
    %1296 = vsyncpa [#allocation3], 1
    %s1297 = scalar_lea.sflag [#allocation3], 1
    %1298 = vsyncpa %s1297, 1
    %1299 = vsyncpa [#allocation4], 1
    %s1300 = scalar_lea.sflag [#allocation4], 1
    %1301 = vsyncpa %s1300, 1

</llo_original>
